<compile_context>
chip_gen: v6e
topology: v6e:2x2x1
jax: 0.10.0
libtpu: 0.0.40
codegen_flags: <defaults>
</compile_context>

<pallas_src>
import jax
import jax.numpy as jnp
from jax.experimental import pallas as pl
from jax.experimental.pallas import tpu as pltpu

# ---- config (mirrors the PyTorch module's config dict) ----
ENV = 16            # environment_size
ENV2 = ENV * ENV    # 256
HID = 32            # hidden_dim
HEADS = 4           # transformer_heads (seq_len==1 -> heads don't matter)
LAYERS = 2          # transformer_layers
FF = 4 * HID        # dim_feedforward = hidden_dim * 4
EPS = 1e-5          # LayerNorm eps (PyTorch default)

# ---- packed-buffer layout -------------------------------------------------
# W32  (bf16, [576, 32])  : rows [0:256)  = w_in (256,32)
#                           per layer l (stride HID+FF=160, base 256+l*160):
#                             [base       : base+HID)     = I + Wv@Wo (32,32)
#                             [base+HID   : base+HID+FF)  = W2_l      (128,32)
# WIDE (bf16, [96, 256])  : rows [l*HID : (l+1)*HID), cols [0:FF) = W1_l (32,128)
#                           rows [64:96)                           = w_out (32,256)
# BIAS (f32,  [16, 256])  : row 0 = b_in, row 1 = b_out,
#                           per layer l (base 2+l*7): bvo, b1, b2, g1, be1, g2, be2
W1_WIDE_ROWS = LAYERS * HID      # 64  (start of w_out in WIDE)
LBIAS_BASE = 2
LBIAS_STRIDE = 7


def _layernorm(x, gamma, beta):
    # One-pass form: E[x] and E[x^2] depend only on x, so both cross-lane
    # reductions issue back-to-back into the XLU (shorter serial chain).
    mu = jnp.mean(x, axis=-1, keepdims=True)
    ms = jnp.mean(x * x, axis=-1, keepdims=True)
    var = ms - mu * mu
    return (x - mu) * jax.lax.rsqrt(var + EPS) * gamma + beta


def global_flow_kernel(x_ref, w32_ref, wide_ref, bias_ref, out_ref):
    # input_linear: (TILE_M, 256) @ (256, 32) + b_in
    xb = x_ref[...].astype(jnp.bfloat16)
    h = (jnp.dot(xb, w32_ref[0:ENV2, :], preferred_element_type=jnp.float32)
         + bias_ref[0:1, 0:HID])

    for l in range(LAYERS):  # static unroll (trip count 2) keeps full LLO visibility
        base = ENV2 + l * (HID + FF)
        wvo = w32_ref[base:base + HID, :]                    # I + Wv@Wo   (32, 32)
        w2 = w32_ref[base + HID:base + HID + FF, :]          # linear2     (128, 32)
        w1 = wide_ref[l * HID:(l + 1) * HID, 0:FF]           # linear1     (32, 128)

        b = LBIAS_BASE + l * LBIAS_STRIDE
        bvo = bias_ref[b + 0:b + 1, 0:HID]
        b1 = bias_ref[b + 1:b + 2, 0:FF]
        b2 = bias_ref[b + 2:b + 3, 0:HID]
        g1 = bias_ref[b + 3:b + 4, 0:HID]
        be1 = bias_ref[b + 4:b + 5, 0:HID]
        g2 = bias_ref[b + 5:b + 6, 0:HID]
        be2 = bias_ref[b + 6:b + 7, 0:HID]

        # --- self-attention block (post-norm). seq_len==1 => softmax==1 and
        # context == V, and the residual is folded into wvo = I + Wv@Wo, so
        # h + attn == h @ wvo + bvo exactly. One MXU pass -> LayerNorm. ---
        h = _layernorm(
            jnp.dot(h.astype(jnp.bfloat16), wvo,
                    preferred_element_type=jnp.float32) + bvo,
            g1, be1)

        # --- feed-forward block (ReLU activation, PyTorch default) ---
        ff = jnp.maximum(
            jnp.dot(h.astype(jnp.bfloat16), w1,
                    preferred_element_type=jnp.float32) + b1, 0.0)
        ff = jnp.dot(ff.astype(jnp.bfloat16), w2,
                     preferred_element_type=jnp.float32) + b2
        h = _layernorm(h + ff, g2, be2)

    # output_layer + final ReLU
    wout = wide_ref[W1_WIDE_ROWS:W1_WIDE_ROWS + HID, :]      # (32, 256)
    y = (jnp.dot(h.astype(jnp.bfloat16), wout,
                 preferred_element_type=jnp.float32) + bias_ref[1:2, :])
    out_ref[...] = jnp.maximum(y, 0.0)


def global_flow_forward(x, packed, tile_m=128):
    """x: (ENV, ENV) single environment (module semantics), or (B, ENV, ENV) /
    (B, ENV2) batch of independent environments (each row == one module call).
    """
    x_flat = jnp.reshape(x, (-1, ENV2)).astype(jnp.float32)
    m = x_flat.shape[0]
    # Keep tiles sublane-aligned; don't allocate more rows than needed.
    tile_m = max(8, min(int(tile_m), pl.cdiv(m, 8) * 8))
    num_tiles = pl.cdiv(m, tile_m)
    m_pad = num_tiles * tile_m
    if m_pad != m:
        x_flat = jnp.pad(x_flat, ((0, m_pad - m), (0, 0)))

    w32, wide, bias = packed['w32'], packed['wide'], packed['bias']

    flops_per_row = 2 * (ENV2 * HID
                         + LAYERS * (HID * HID + HID * FF + FF * HID)
                         + HID * ENV2)
    weight_bytes = w32.size * 2 + wide.size * 2 + bias.size * 4
    cost = pl.CostEstimate(
        flops=int(flops_per_row * m_pad),
        transcendentals=int(2 * LAYERS * m_pad),          # rsqrt per LN per row
        bytes_accessed=int(weight_bytes + 2 * m_pad * ENV2 * 4))

    out = pl.pallas_call(
        global_flow_kernel,
        out_shape=jax.ShapeDtypeStruct((m_pad, ENV2), jnp.float32),
        grid=(num_tiles,),
        in_specs=[
            pl.BlockSpec((tile_m, ENV2), lambda i: (i, 0)),   # activations, tiled over M
            pl.BlockSpec(w32.shape, lambda i: (0, 0)),        # weight slabs: loaded once,
            pl.BlockSpec(wide.shape, lambda i: (0, 0)),       # reused across grid steps
            pl.BlockSpec(bias.shape, lambda i: (0, 0)),
        ],
        out_specs=pl.BlockSpec((tile_m, ENV2), lambda i: (i, 0)),
        compiler_params=pltpu.CompilerParams(
            dimension_semantics=("parallel",)),               # v7x: split M across 2 TCs
        cost_estimate=cost,
    )(x_flat, w32, wide, bias)
    # module: x.view(-1, ENV, ENV)  (ReLU already applied in-kernel)
    return out[:m].reshape(-1, ENV, ENV)


# ---- parameter construction ------------------------------------------------
def init_params(key):
    """Deterministic synthetic parameters matching the module's shapes (f32,
    linear weights stored pre-transposed so every linear is x @ W + b)."""
    def nrm(k, shape, scale=0.02):
        return scale * jax.random.normal(k, shape, jnp.float32)

    ks = jax.random.split(key, 5)
    raw = {'w_in': nrm(ks[0], (HID, ENV2)).T,          # (256, 32)
           'b_in': nrm(ks[1], (1, HID))}
    for name in ('wv', 'bv', 'wo', 'bo', 'w1', 'b1', 'w2', 'b2',
                 'g1', 'be1', 'g2', 'be2'):
        raw[name] = []
    lkeys = jax.random.split(ks[2], LAYERS)
    for l in range(LAYERS):
        sk = jax.random.split(lkeys[l], 8)
        in_proj_w = nrm(sk[0], (3 * HID, HID))          # MHA packed [q; k; v]
        in_proj_b = nrm(sk[1], (3 * HID,))
        raw['wv'].append(in_proj_w[2 * HID:3 * HID].T)              # (32, 32)
        raw['bv'].append(in_proj_b[2 * HID:3 * HID].reshape(1, HID))
        raw['wo'].append(nrm(sk[2], (HID, HID)).T)                   # out_proj
        raw['bo'].append(nrm(sk[3], (1, HID)))
        raw['w1'].append(nrm(sk[4], (FF, HID)).T)                    # (32, 128)
        raw['b1'].append(nrm(sk[5], (1, FF)))
        raw['w2'].append(nrm(sk[6], (HID, FF)).T)                    # (128, 32)
        raw['b2'].append(nrm(sk[7], (1, HID)))
        raw['g1'].append(jnp.ones((1, HID), jnp.float32))            # LN defaults
        raw['be1'].append(jnp.zeros((1, HID), jnp.float32))
        raw['g2'].append(jnp.ones((1, HID), jnp.float32))
        raw['be2'].append(jnp.zeros((1, HID), jnp.float32))
    raw['w_out'] = nrm(ks[3], (ENV2, HID)).T            # (32, 256)
    raw['b_out'] = nrm(ks[4], (1, ENV2))
    return raw


def pack_params(raw):
    """Fuse attention projections (+residual) and pack into 3 VMEM slabs.
    Done once; the packed slabs are reused by every forward call."""
    eye = jnp.eye(HID, dtype=jnp.float32)
    # exact fusion (seq_len == 1): h + attn == h @ (I + Wv@Wo) + (bv@Wo + bo); f32
    wvo = [eye + raw['wv'][l] @ raw['wo'][l] for l in range(LAYERS)]
    bvo = [raw['bv'][l] @ raw['wo'][l] + raw['bo'][l] for l in range(LAYERS)]

    # W32: all weights whose output dim is HID, stacked along rows
    rows = [raw['w_in']]
    for l in range(LAYERS):
        rows.append(wvo[l])
        rows.append(raw['w2'][l])
    w32 = jnp.concatenate(rows, axis=0).astype(jnp.bfloat16)         # (576, 32)

    # WIDE: per-layer W1 (padded to 256 lanes) followed by w_out
    wide_rows = [jnp.pad(raw['w1'][l], ((0, 0), (0, ENV2 - FF)))
                 for l in range(LAYERS)]
    wide_rows.append(raw['w_out'])
    wide = jnp.concatenate(wide_rows, axis=0).astype(jnp.bfloat16)   # (96, 256)

    # BIAS slab (f32): each vector zero-padded to 256 lanes
    def pad_row(v):
        v = jnp.reshape(v, (1, -1))
        return jnp.pad(v, ((0, 0), (0, ENV2 - v.shape[1])))

    brows = [pad_row(raw['b_in']), pad_row(raw['b_out'])]
    for l in range(LAYERS):
        brows += [pad_row(bvo[l]), pad_row(raw['b1'][l]), pad_row(raw['b2'][l]),
                  pad_row(raw['g1'][l]), pad_row(raw['be1'][l]),
                  pad_row(raw['g2'][l]), pad_row(raw['be2'][l])]
    bias = jnp.concatenate(brows, axis=0).astype(jnp.float32)        # (16, 256)

    return {'w32': w32, 'wide': wide, 'bias': bias}


def reference_forward(x, raw):
    """Pure-JAX f32 reference of the module's eval-mode forward, applied to
    each row independently (two-pass LayerNorm, unfused attention)."""
    def ln(v, g, b):
        mu = jnp.mean(v, axis=-1, keepdims=True)
        var = jnp.mean((v - mu) ** 2, axis=-1, keepdims=True)
        return (v - mu) * jax.lax.rsqrt(var + EPS) * g + b

    h = jnp.reshape(x, (-1, ENV2)).astype(jnp.float32) @ raw['w_in'] + raw['b_in']
    for l in range(LAYERS):
        v = h @ raw['wv'][l] + raw['bv'][l]          # softmax over 1 key == 1 => ctx == V
        attn = v @ raw['wo'][l] + raw['bo'][l]
        h = ln(h + attn, raw['g1'][l], raw['be1'][l])
        ff = jnp.maximum(h @ raw['w1'][l] + raw['b1'][l], 0.0)
        ff = ff @ raw['w2'][l] + raw['b2'][l]
        h = ln(h + ff, raw['g2'][l], raw['be2'][l])
    y = h @ raw['w_out'] + raw['b_out']
    return jnp.maximum(y, 0.0).reshape(-1, ENV, ENV)


if __name__ == "__main__":
    key = jax.random.PRNGKey(0)
    pkey, xkey = jax.random.split(key)
    raw = init_params(pkey)
    packed = pack_params(raw)

    # Batch of independent environments (each row == one module forward call).
    B = 16
    x = jax.random.normal(xkey, (B, ENV, ENV), jnp.float32)

    fwd = jax.jit(lambda xs: global_flow_forward(xs, packed, tile_m=8))
    out = jax.block_until_ready(fwd(x))

    assert out.shape == (B, ENV, ENV), out.shape
    assert bool(jnp.all(out >= 0.0)), "final ReLU violated"
    assert bool(jnp.all(jnp.isfinite(out))), "non-finite output"

    ref = reference_forward(x, raw)
    max_err = float(jnp.max(jnp.abs(out - ref)))
    assert max_err < 3e-2, f"mismatch vs f32 reference: max abs err {max_err}"

    # Single-environment call: exactly the module's forward (x.view(1, -1)).
    out1 = jax.block_until_ready(global_flow_forward(x[0], packed))
    assert out1.shape == (1, ENV, ENV), out1.shape
    single_err = float(jnp.max(jnp.abs(out1[0] - out[0])))
    assert single_err < 1e-5, f"batched vs single-row mismatch: {single_err}"

    print("KERNEL_OK")
</pallas_src>

<mosaic_0001>
module attributes {stable_mosaic.version = 11 : i64} {
  func.func @global_flow_kernel(%arg0: i32, %arg1: memref<8x256xf32, #tpu.memory_space<vmem>>, %arg2: memref<576x32xbf16, #tpu.memory_space<vmem>>, %arg3: memref<96x256xbf16, #tpu.memory_space<vmem>>, %arg4: memref<16x256xf32, #tpu.memory_space<vmem>>, %arg5: memref<8x256xf32, #tpu.memory_space<vmem>>) attributes {dimension_semantics = [#tpu.dimension_semantics<parallel>], iteration_bounds = array<i64: 2>, scalar_prefetch = 0 : i64, scratch_operands = 0 : i64, tpu.core_type = #tpu.core_type<tc>, window_params = [{transform_indices = @transform_0, window_bounds = array<i64: 8, 256>}, {pipeline_mode = #tpu.pipeline_mode<synchronous>, transform_indices = @transform_1, window_bounds = array<i64: 576, 32>}, {pipeline_mode = #tpu.pipeline_mode<synchronous>, transform_indices = @transform_2, window_bounds = array<i64: 96, 256>}, {pipeline_mode = #tpu.pipeline_mode<synchronous>, transform_indices = @transform_3, window_bounds = array<i64: 16, 256>}, {transform_indices = @transform_4, window_bounds = array<i64: 8, 256>}]} {
    %c0 = arith.constant 0 : index
    %c0_0 = arith.constant 0 : index
    %0 = vector.load %arg1[%c0, %c0_0] : memref<8x256xf32, #tpu.memory_space<vmem>>, vector<8x256xf32>
    %1 = arith.truncf %0 : vector<8x256xf32> to vector<8x256xbf16>
    %c0_1 = arith.constant 0 : index
    %c0_2 = arith.constant 0 : index
    %2 = vector.load %arg2[%c0_1, %c0_2] : memref<576x32xbf16, #tpu.memory_space<vmem>>, vector<256x32xbf16>
    %cst = arith.constant dense<0.000000e+00> : vector<8x32xf32>
    %3 = tpu.matmul %1, %2, %cst {dimension_numbers = #tpu.dot_dimension_numbers<[1], [0], [0], [1], [0, 0, 1, 1], [], []>} : vector<8x256xbf16>, vector<256x32xbf16>, vector<8x32xf32> -> vector<8x32xf32>
    %c0_3 = arith.constant 0 : index
    %c0_4 = arith.constant 0 : index
    %4 = vector.load %arg4[%c0_3, %c0_4] : memref<16x256xf32, #tpu.memory_space<vmem>>, vector<1x32xf32>
    %5 = vector.broadcast %4 : vector<1x32xf32> to vector<8x32xf32>
    %6 = arith.addf %3, %5 : vector<8x32xf32>
    %c256 = arith.constant 256 : index
    %c0_5 = arith.constant 0 : index
    %7 = vector.load %arg2[%c256, %c0_5] : memref<576x32xbf16, #tpu.memory_space<vmem>>, vector<32x32xbf16>
    %c288 = arith.constant 288 : index
    %c0_6 = arith.constant 0 : index
    %8 = vector.load %arg2[%c288, %c0_6] : memref<576x32xbf16, #tpu.memory_space<vmem>>, vector<128x32xbf16>
    %c0_7 = arith.constant 0 : index
    %c0_8 = arith.constant 0 : index
    %9 = vector.load %arg3[%c0_7, %c0_8] : memref<96x256xbf16, #tpu.memory_space<vmem>>, vector<32x128xbf16>
    %c2 = arith.constant 2 : index
    %c0_9 = arith.constant 0 : index
    %10 = vector.load %arg4[%c2, %c0_9] : memref<16x256xf32, #tpu.memory_space<vmem>>, vector<1x32xf32>
    %c3 = arith.constant 3 : index
    %c0_10 = arith.constant 0 : index
    %11 = vector.load %arg4[%c3, %c0_10] : memref<16x256xf32, #tpu.memory_space<vmem>>, vector<1x128xf32>
    %c4 = arith.constant 4 : index
    %c0_11 = arith.constant 0 : index
    %12 = vector.load %arg4[%c4, %c0_11] : memref<16x256xf32, #tpu.memory_space<vmem>>, vector<1x32xf32>
    %c5 = arith.constant 5 : index
    %c0_12 = arith.constant 0 : index
    %13 = vector.load %arg4[%c5, %c0_12] : memref<16x256xf32, #tpu.memory_space<vmem>>, vector<1x32xf32>
    %c6 = arith.constant 6 : index
    %c0_13 = arith.constant 0 : index
    %14 = vector.load %arg4[%c6, %c0_13] : memref<16x256xf32, #tpu.memory_space<vmem>>, vector<1x32xf32>
    %c7 = arith.constant 7 : index
    %c0_14 = arith.constant 0 : index
    %15 = vector.load %arg4[%c7, %c0_14] : memref<16x256xf32, #tpu.memory_space<vmem>>, vector<1x32xf32>
    %c8 = arith.constant 8 : index
    %c0_15 = arith.constant 0 : index
    %16 = vector.load %arg4[%c8, %c0_15] : memref<16x256xf32, #tpu.memory_space<vmem>>, vector<1x32xf32>
    %17 = arith.truncf %6 : vector<8x32xf32> to vector<8x32xbf16>
    %cst_16 = arith.constant dense<0.000000e+00> : vector<8x32xf32>
    %18 = tpu.matmul %17, %7, %cst_16 {dimension_numbers = #tpu.dot_dimension_numbers<[1], [0], [0], [1], [0, 0, 1, 1], [], []>} : vector<8x32xbf16>, vector<32x32xbf16>, vector<8x32xf32> -> vector<8x32xf32>
    %19 = vector.broadcast %10 : vector<1x32xf32> to vector<8x32xf32>
    %20 = arith.addf %18, %19 : vector<8x32xf32>
    %cst_17 = arith.constant dense<0.000000e+00> : vector<8xf32>
    %21 = vector.multi_reduction <add>, %20, %cst_17 [1] : vector<8x32xf32> to vector<8xf32>
    %22 = vector.shape_cast %21 : vector<8xf32> to vector<8x1xf32>
    %cst_18 = arith.constant 3.200000e+01 : f32
    %23 = vector.broadcast %cst_18 : f32 to vector<8x1xf32>
    %24 = arith.divf %22, %23 : vector<8x1xf32>
    %25 = arith.mulf %20, %20 : vector<8x32xf32>
    %cst_19 = arith.constant dense<0.000000e+00> : vector<8xf32>
    %26 = vector.multi_reduction <add>, %25, %cst_19 [1] : vector<8x32xf32> to vector<8xf32>
    %27 = vector.shape_cast %26 : vector<8xf32> to vector<8x1xf32>
    %cst_20 = arith.constant 3.200000e+01 : f32
    %28 = vector.broadcast %cst_20 : f32 to vector<8x1xf32>
    %29 = arith.divf %27, %28 : vector<8x1xf32>
    %30 = arith.mulf %24, %24 : vector<8x1xf32>
    %31 = arith.subf %29, %30 : vector<8x1xf32>
    %32 = vector.broadcast %24 : vector<8x1xf32> to vector<8x32xf32>
    %33 = arith.subf %20, %32 : vector<8x32xf32>
    %cst_21 = arith.constant 9.99999974E-6 : f32
    %34 = vector.broadcast %cst_21 : f32 to vector<8x1xf32>
    %35 = arith.addf %31, %34 : vector<8x1xf32>
    %36 = math.rsqrt %35 : vector<8x1xf32>
    %37 = vector.broadcast %36 : vector<8x1xf32> to vector<8x32xf32>
    %38 = arith.mulf %33, %37 : vector<8x32xf32>
    %39 = vector.broadcast %13 : vector<1x32xf32> to vector<8x32xf32>
    %40 = arith.mulf %38, %39 : vector<8x32xf32>
    %41 = vector.broadcast %14 : vector<1x32xf32> to vector<8x32xf32>
    %42 = arith.addf %40, %41 : vector<8x32xf32>
    %43 = arith.truncf %42 : vector<8x32xf32> to vector<8x32xbf16>
    %cst_22 = arith.constant dense<0.000000e+00> : vector<8x128xf32>
    %44 = tpu.matmul %43, %9, %cst_22 {dimension_numbers = #tpu.dot_dimension_numbers<[1], [0], [0], [1], [0, 0, 1, 1], [], []>} : vector<8x32xbf16>, vector<32x128xbf16>, vector<8x128xf32> -> vector<8x128xf32>
    %45 = vector.broadcast %11 : vector<1x128xf32> to vector<8x128xf32>
    %46 = arith.addf %44, %45 : vector<8x128xf32>
    %cst_23 = arith.constant 0.000000e+00 : f32
    %47 = vector.broadcast %cst_23 : f32 to vector<8x128xf32>
    %48 = arith.maximumf %46, %47 : vector<8x128xf32>
    %49 = arith.truncf %48 : vector<8x128xf32> to vector<8x128xbf16>
    %cst_24 = arith.constant dense<0.000000e+00> : vector<8x32xf32>
    %50 = tpu.matmul %49, %8, %cst_24 {dimension_numbers = #tpu.dot_dimension_numbers<[1], [0], [0], [1], [0, 0, 1, 1], [], []>} : vector<8x128xbf16>, vector<128x32xbf16>, vector<8x32xf32> -> vector<8x32xf32>
    %51 = vector.broadcast %12 : vector<1x32xf32> to vector<8x32xf32>
    %52 = arith.addf %50, %51 : vector<8x32xf32>
    %53 = arith.addf %42, %52 : vector<8x32xf32>
    %cst_25 = arith.constant dense<0.000000e+00> : vector<8xf32>
    %54 = vector.multi_reduction <add>, %53, %cst_25 [1] : vector<8x32xf32> to vector<8xf32>
    %55 = vector.shape_cast %54 : vector<8xf32> to vector<8x1xf32>
    %cst_26 = arith.constant 3.200000e+01 : f32
    %56 = vector.broadcast %cst_26 : f32 to vector<8x1xf32>
    %57 = arith.divf %55, %56 : vector<8x1xf32>
    %58 = arith.mulf %53, %53 : vector<8x32xf32>
    %cst_27 = arith.constant dense<0.000000e+00> : vector<8xf32>
    %59 = vector.multi_reduction <add>, %58, %cst_27 [1] : vector<8x32xf32> to vector<8xf32>
    %60 = vector.shape_cast %59 : vector<8xf32> to vector<8x1xf32>
    %cst_28 = arith.constant 3.200000e+01 : f32
    %61 = vector.broadcast %cst_28 : f32 to vector<8x1xf32>
    %62 = arith.divf %60, %61 : vector<8x1xf32>
    %63 = arith.mulf %57, %57 : vector<8x1xf32>
    %64 = arith.subf %62, %63 : vector<8x1xf32>
    %65 = vector.broadcast %57 : vector<8x1xf32> to vector<8x32xf32>
    %66 = arith.subf %53, %65 : vector<8x32xf32>
    %cst_29 = arith.constant 9.99999974E-6 : f32
    %67 = vector.broadcast %cst_29 : f32 to vector<8x1xf32>
    %68 = arith.addf %64, %67 : vector<8x1xf32>
    %69 = math.rsqrt %68 : vector<8x1xf32>
    %70 = vector.broadcast %69 : vector<8x1xf32> to vector<8x32xf32>
    %71 = arith.mulf %66, %70 : vector<8x32xf32>
    %72 = vector.broadcast %15 : vector<1x32xf32> to vector<8x32xf32>
    %73 = arith.mulf %71, %72 : vector<8x32xf32>
    %74 = vector.broadcast %16 : vector<1x32xf32> to vector<8x32xf32>
    %75 = arith.addf %73, %74 : vector<8x32xf32>
    %c416 = arith.constant 416 : index
    %c0_30 = arith.constant 0 : index
    %76 = vector.load %arg2[%c416, %c0_30] : memref<576x32xbf16, #tpu.memory_space<vmem>>, vector<32x32xbf16>
    %c448 = arith.constant 448 : index
    %c0_31 = arith.constant 0 : index
    %77 = vector.load %arg2[%c448, %c0_31] : memref<576x32xbf16, #tpu.memory_space<vmem>>, vector<128x32xbf16>
    %c32 = arith.constant 32 : index
    %c0_32 = arith.constant 0 : index
    %78 = vector.load %arg3[%c32, %c0_32] : memref<96x256xbf16, #tpu.memory_space<vmem>>, vector<32x128xbf16>
    %c9 = arith.constant 9 : index
    %c0_33 = arith.constant 0 : index
    %79 = vector.load %arg4[%c9, %c0_33] : memref<16x256xf32, #tpu.memory_space<vmem>>, vector<1x32xf32>
    %c10 = arith.constant 10 : index
    %c0_34 = arith.constant 0 : index
    %80 = vector.load %arg4[%c10, %c0_34] : memref<16x256xf32, #tpu.memory_space<vmem>>, vector<1x128xf32>
    %c11 = arith.constant 11 : index
    %c0_35 = arith.constant 0 : index
    %81 = vector.load %arg4[%c11, %c0_35] : memref<16x256xf32, #tpu.memory_space<vmem>>, vector<1x32xf32>
    %c12 = arith.constant 12 : index
    %c0_36 = arith.constant 0 : index
    %82 = vector.load %arg4[%c12, %c0_36] : memref<16x256xf32, #tpu.memory_space<vmem>>, vector<1x32xf32>
    %c13 = arith.constant 13 : index
    %c0_37 = arith.constant 0 : index
    %83 = vector.load %arg4[%c13, %c0_37] : memref<16x256xf32, #tpu.memory_space<vmem>>, vector<1x32xf32>
    %c14 = arith.constant 14 : index
    %c0_38 = arith.constant 0 : index
    %84 = vector.load %arg4[%c14, %c0_38] : memref<16x256xf32, #tpu.memory_space<vmem>>, vector<1x32xf32>
    %c15 = arith.constant 15 : index
    %c0_39 = arith.constant 0 : index
    %85 = vector.load %arg4[%c15, %c0_39] : memref<16x256xf32, #tpu.memory_space<vmem>>, vector<1x32xf32>
    %86 = arith.truncf %75 : vector<8x32xf32> to vector<8x32xbf16>
    %cst_40 = arith.constant dense<0.000000e+00> : vector<8x32xf32>
    %87 = tpu.matmul %86, %76, %cst_40 {dimension_numbers = #tpu.dot_dimension_numbers<[1], [0], [0], [1], [0, 0, 1, 1], [], []>} : vector<8x32xbf16>, vector<32x32xbf16>, vector<8x32xf32> -> vector<8x32xf32>
    %88 = vector.broadcast %79 : vector<1x32xf32> to vector<8x32xf32>
    %89 = arith.addf %87, %88 : vector<8x32xf32>
    %cst_41 = arith.constant dense<0.000000e+00> : vector<8xf32>
    %90 = vector.multi_reduction <add>, %89, %cst_41 [1] : vector<8x32xf32> to vector<8xf32>
    %91 = vector.shape_cast %90 : vector<8xf32> to vector<8x1xf32>
    %cst_42 = arith.constant 3.200000e+01 : f32
    %92 = vector.broadcast %cst_42 : f32 to vector<8x1xf32>
    %93 = arith.divf %91, %92 : vector<8x1xf32>
    %94 = arith.mulf %89, %89 : vector<8x32xf32>
    %cst_43 = arith.constant dense<0.000000e+00> : vector<8xf32>
    %95 = vector.multi_reduction <add>, %94, %cst_43 [1] : vector<8x32xf32> to vector<8xf32>
    %96 = vector.shape_cast %95 : vector<8xf32> to vector<8x1xf32>
    %cst_44 = arith.constant 3.200000e+01 : f32
    %97 = vector.broadcast %cst_44 : f32 to vector<8x1xf32>
    %98 = arith.divf %96, %97 : vector<8x1xf32>
    %99 = arith.mulf %93, %93 : vector<8x1xf32>
    %100 = arith.subf %98, %99 : vector<8x1xf32>
    %101 = vector.broadcast %93 : vector<8x1xf32> to vector<8x32xf32>
    %102 = arith.subf %89, %101 : vector<8x32xf32>
    %cst_45 = arith.constant 9.99999974E-6 : f32
    %103 = vector.broadcast %cst_45 : f32 to vector<8x1xf32>
    %104 = arith.addf %100, %103 : vector<8x1xf32>
    %105 = math.rsqrt %104 : vector<8x1xf32>
    %106 = vector.broadcast %105 : vector<8x1xf32> to vector<8x32xf32>
    %107 = arith.mulf %102, %106 : vector<8x32xf32>
    %108 = vector.broadcast %82 : vector<1x32xf32> to vector<8x32xf32>
    %109 = arith.mulf %107, %108 : vector<8x32xf32>
    %110 = vector.broadcast %83 : vector<1x32xf32> to vector<8x32xf32>
    %111 = arith.addf %109, %110 : vector<8x32xf32>
    %112 = arith.truncf %111 : vector<8x32xf32> to vector<8x32xbf16>
    %cst_46 = arith.constant dense<0.000000e+00> : vector<8x128xf32>
    %113 = tpu.matmul %112, %78, %cst_46 {dimension_numbers = #tpu.dot_dimension_numbers<[1], [0], [0], [1], [0, 0, 1, 1], [], []>} : vector<8x32xbf16>, vector<32x128xbf16>, vector<8x128xf32> -> vector<8x128xf32>
    %114 = vector.broadcast %80 : vector<1x128xf32> to vector<8x128xf32>
    %115 = arith.addf %113, %114 : vector<8x128xf32>
    %cst_47 = arith.constant 0.000000e+00 : f32
    %116 = vector.broadcast %cst_47 : f32 to vector<8x128xf32>
    %117 = arith.maximumf %115, %116 : vector<8x128xf32>
    %118 = arith.truncf %117 : vector<8x128xf32> to vector<8x128xbf16>
    %cst_48 = arith.constant dense<0.000000e+00> : vector<8x32xf32>
    %119 = tpu.matmul %118, %77, %cst_48 {dimension_numbers = #tpu.dot_dimension_numbers<[1], [0], [0], [1], [0, 0, 1, 1], [], []>} : vector<8x128xbf16>, vector<128x32xbf16>, vector<8x32xf32> -> vector<8x32xf32>
    %120 = vector.broadcast %81 : vector<1x32xf32> to vector<8x32xf32>
    %121 = arith.addf %119, %120 : vector<8x32xf32>
    %122 = arith.addf %111, %121 : vector<8x32xf32>
    %cst_49 = arith.constant dense<0.000000e+00> : vector<8xf32>
    %123 = vector.multi_reduction <add>, %122, %cst_49 [1] : vector<8x32xf32> to vector<8xf32>
    %124 = vector.shape_cast %123 : vector<8xf32> to vector<8x1xf32>
    %cst_50 = arith.constant 3.200000e+01 : f32
    %125 = vector.broadcast %cst_50 : f32 to vector<8x1xf32>
    %126 = arith.divf %124, %125 : vector<8x1xf32>
    %127 = arith.mulf %122, %122 : vector<8x32xf32>
    %cst_51 = arith.constant dense<0.000000e+00> : vector<8xf32>
    %128 = vector.multi_reduction <add>, %127, %cst_51 [1] : vector<8x32xf32> to vector<8xf32>
    %129 = vector.shape_cast %128 : vector<8xf32> to vector<8x1xf32>
    %cst_52 = arith.constant 3.200000e+01 : f32
    %130 = vector.broadcast %cst_52 : f32 to vector<8x1xf32>
    %131 = arith.divf %129, %130 : vector<8x1xf32>
    %132 = arith.mulf %126, %126 : vector<8x1xf32>
    %133 = arith.subf %131, %132 : vector<8x1xf32>
    %134 = vector.broadcast %126 : vector<8x1xf32> to vector<8x32xf32>
    %135 = arith.subf %122, %134 : vector<8x32xf32>
    %cst_53 = arith.constant 9.99999974E-6 : f32
    %136 = vector.broadcast %cst_53 : f32 to vector<8x1xf32>
    %137 = arith.addf %133, %136 : vector<8x1xf32>
    %138 = math.rsqrt %137 : vector<8x1xf32>
    %139 = vector.broadcast %138 : vector<8x1xf32> to vector<8x32xf32>
    %140 = arith.mulf %135, %139 : vector<8x32xf32>
    %141 = vector.broadcast %84 : vector<1x32xf32> to vector<8x32xf32>
    %142 = arith.mulf %140, %141 : vector<8x32xf32>
    %143 = vector.broadcast %85 : vector<1x32xf32> to vector<8x32xf32>
    %144 = arith.addf %142, %143 : vector<8x32xf32>
    %c64 = arith.constant 64 : index
    %c0_54 = arith.constant 0 : index
    %145 = vector.load %arg3[%c64, %c0_54] : memref<96x256xbf16, #tpu.memory_space<vmem>>, vector<32x256xbf16>
    %146 = arith.truncf %144 : vector<8x32xf32> to vector<8x32xbf16>
    %cst_55 = arith.constant dense<0.000000e+00> : vector<8x256xf32>
    %147 = tpu.matmul %146, %145, %cst_55 {dimension_numbers = #tpu.dot_dimension_numbers<[1], [0], [0], [1], [0, 0, 1, 1], [], []>} : vector<8x32xbf16>, vector<32x256xbf16>, vector<8x256xf32> -> vector<8x256xf32>
    %c1 = arith.constant 1 : index
    %c0_56 = arith.constant 0 : index
    %148 = vector.load %arg4[%c1, %c0_56] : memref<16x256xf32, #tpu.memory_space<vmem>>, vector<1x256xf32>
    %149 = vector.broadcast %148 : vector<1x256xf32> to vector<8x256xf32>
    %150 = arith.addf %147, %149 : vector<8x256xf32>
    %cst_57 = arith.constant 0.000000e+00 : f32
    %151 = vector.broadcast %cst_57 : f32 to vector<8x256xf32>
    %152 = arith.maximumf %150, %151 : vector<8x256xf32>
    %c0_58 = arith.constant 0 : index
    %c0_59 = arith.constant 0 : index
    %153 = vector.load %arg5[%c0_58, %c0_59] : memref<8x256xf32, #tpu.memory_space<vmem>>, vector<8x256xf32>
    tpu.vector_store %arg5[%c0_58, %c0_59], %152 {strides = array<i32>} : memref<8x256xf32, #tpu.memory_space<vmem>>, vector<8x256xf32>,
    return
  }
  func.func @transform_0(%arg0: i32) -> (i32, i32) {
    %c0_i32 = arith.constant 0 : i32
    %c0_i32_0 = arith.constant 0 : i32
    return %arg0, %c0_i32 : i32, i32
  }
  func.func @transform_1(%arg0: i32) -> (i32, i32) {
    %c0_i32 = arith.constant 0 : i32
    %c0_i32_0 = arith.constant 0 : i32
    %c0_i32_1 = arith.constant 0 : i32
    return %c0_i32, %c0_i32_0 : i32, i32
  }
  func.func @transform_2(%arg0: i32) -> (i32, i32) {
    %c0_i32 = arith.constant 0 : i32
    %c0_i32_0 = arith.constant 0 : i32
    %c0_i32_1 = arith.constant 0 : i32
    return %c0_i32, %c0_i32_0 : i32, i32
  }
  func.func @transform_3(%arg0: i32) -> (i32, i32) {
    %c0_i32 = arith.constant 0 : i32
    %c0_i32_0 = arith.constant 0 : i32
    %c0_i32_1 = arith.constant 0 : i32
    return %c0_i32, %c0_i32_0 : i32, i32
  }
  func.func @transform_4(%arg0: i32) -> (i32, i32) {
    %c0_i32 = arith.constant 0 : i32
    %c0_i32_0 = arith.constant 0 : i32
    return %arg0, %c0_i32 : i32, i32
  }
}

</mosaic_0001>

<llo_original>
// kernel: _lambda_.1
$region0: #{_lambda_.1}
  #allocation0 [shape = 'u32[]', space=smem, size = 0x4, offset = 0x4, fixed_abs, tag = 'smem constant byte address 0x4 - core index']
  #allocation1 [shape = 'u32[144,128]{1,0:T(1,128)}', space=vmem, size = 0x12000, scoped, tag = 'internal scratch']
  %s0 = inlined_call_operand.vmem [shape: f32[16,256], index: 0, kind: input, shape index: {}]
  %s1 = inlined_call_operand.vmem [shape: bf16[576,32], index: 1, kind: input, shape index: {}]
  %s2 = inlined_call_operand.hbm [shape: bf16[96,256], index: 2, kind: input, shape index: {}]
  %s3 = inlined_call_operand.hbm [shape: f32[16,256], index: 3, kind: input, shape index: {}]
  %s4 = inlined_call_operand.vmem [shape: f32[16,256], index: 4, kind: output, shape index: {}]
  %s5 = sld [smem:[#allocation0]]
  $region57: #{_lambda_.1} parent=0
    _
  %s7 = ssub.s32 1, %s5
  %s8 = scalar_select 0, %s7, %s5
  $region1: #{_lambda_.1} parent=0
    #allocation2 [shape = 'u8[49152]{0}', space=vmem, size = 0xc000, scoped, tag = 'input window, operand 2, single buffered']
    #allocation3 [shape = 's32[2]{0}', space=sflag, size = 0x8, scoped, tag = 'scoped memory for _lambda_.1']
    #allocation4 [shape = 'u8[16384]{0}', space=vmem, size = 0x4000, scoped, tag = 'input window, operand 3, single buffered']
    #allocation5 [shape = 's32[1]{0}', space=sflag, size = 0x4, scoped, tag = 'scoped memory for _lambda_.1']
    %9 = vsyncpa [#allocation3], 0
    %10 = vsyncpa [#allocation5], 0
    loop: start=0, step=1, limit=4
    $region2: #{_lambda_.1} parent=1 // loop_pre_header
      _
    $region3: #{_lambda_.1} parent=1 // loop_header
      %s12 = sphi 0, %s16
      %p13 = scmp.ge.s32.totalorder %s12, 4
      %s22 = sphi 0, %s24
      %s25 = sphi 0, %s22
      %s26 = sphi 0, %s25
      %s42 = sphi 0, %s26
      %s46 = sphi 0, %s46
      %s48 = sphi 0, %s46
      %s49 = sphi 0, %s48
      %s63 = sphi 0, %s49
      %s67 = sphi 0, %s67
      %s69 = sphi 0, %s67
      %s70 = sphi 0, %s69
      %s84 = sphi 0, %s70
      %s88 = sphi 0, %s88
      %s90 = sphi 0, %s88
      %s91 = sphi 0, %s90
      %s105 = sphi 0, %s91
      %s111 = sphi 0, %s113
      %s114 = sphi 0, %s111
      %s115 = sphi 0, %s114
      %s131 = sphi 0, %s115
    $region4: #{_lambda_.1} parent=1 // loop_header_branch
      %15 = sbr.rel (%p13) target = $region8
    $region5: #{_lambda_.1} parent=1 // loop_body
      %s17 = ssub.s32 %s12, 1
      %s18 = ssub.s32 %s12, 2
      %s19 = sadd.s32 %s12, 1
      %s20 = ssub.s32 %s12, %s19
      %p21 = scmp.eq.s32.totalorder %s20, 0
      %s23 = sadd.s32 %s22, 1
      %s24 = scalar_select %p21, %s22, %s23
      %p27 = pneg %p21
      %p28 = scmp.eq.s32.totalorder %s12, 1
      %p29 = por %p27, %p28
      %p30 = scmp.ne.s32.totalorder %s22, %s25
      %p31 = scmp.eq.s32.totalorder %s12, 0
      %p32 = por %p30, %p31
      %p33 = scmp.ne.s32.totalorder %s22, %s25
      %p34 = scmp.eq.s32.totalorder %s17, 1
      %p35 = por %p33, %p34
      %p36 = scmp.ne.s32.totalorder %s25, %s26
      %p37 = scmp.eq.s32.totalorder %s17, 0
      %p38 = por %p36, %p37
      %p39 = scmp.ne.s32.totalorder %s25, %s26
      %p40 = scmp.eq.s32.totalorder %s18, 1
      %p41 = por %p39, %p40
      %p43 = scmp.ne.s32.totalorder %s26, %s42
      %p44 = scmp.eq.s32.totalorder %s18, 0
      %p45 = por %p43, %p44
      %s47 = sadd.s32 %s46, 1
      %p50 = scmp.eq.s32.totalorder %s12, 1
      %p51 = scmp.ne.s32.totalorder %s46, %s48
      %p52 = scmp.eq.s32.totalorder %s12, 0
      %p53 = por %p51, %p52
      %p54 = scmp.ne.s32.totalorder %s46, %s48
      %p55 = scmp.eq.s32.totalorder %s17, 1
      %p56 = por %p54, %p55
      %p57 = scmp.ne.s32.totalorder %s48, %s49
      %p58 = scmp.eq.s32.totalorder %s17, 0
      %p59 = por %p57, %p58
      %p60 = scmp.ne.s32.totalorder %s48, %s49
      %p61 = scmp.eq.s32.totalorder %s18, 1
      %p62 = por %p60, %p61
      %p64 = scmp.ne.s32.totalorder %s49, %s63
      %p65 = scmp.eq.s32.totalorder %s18, 0
      %p66 = por %p64, %p65
      %s68 = sadd.s32 %s67, 1
      %p71 = scmp.eq.s32.totalorder %s12, 1
      %p72 = scmp.ne.s32.totalorder %s67, %s69
      %p73 = scmp.eq.s32.totalorder %s12, 0
      %p74 = por %p72, %p73
      %p75 = scmp.ne.s32.totalorder %s67, %s69
      %p76 = scmp.eq.s32.totalorder %s17, 1
      %p77 = por %p75, %p76
      %p78 = scmp.ne.s32.totalorder %s69, %s70
      %p79 = scmp.eq.s32.totalorder %s17, 0
      %p80 = por %p78, %p79
      %p81 = scmp.ne.s32.totalorder %s69, %s70
      %p82 = scmp.eq.s32.totalorder %s18, 1
      %p83 = por %p81, %p82
      %p85 = scmp.ne.s32.totalorder %s70, %s84
      %p86 = scmp.eq.s32.totalorder %s18, 0
      %p87 = por %p85, %p86
      %s89 = sadd.s32 %s88, 1
      %p92 = scmp.eq.s32.totalorder %s12, 1
      %p93 = scmp.ne.s32.totalorder %s88, %s90
      %p94 = scmp.eq.s32.totalorder %s12, 0
      %p95 = por %p93, %p94
      %p96 = scmp.ne.s32.totalorder %s88, %s90
      %p97 = scmp.eq.s32.totalorder %s17, 1
      %p98 = por %p96, %p97
      %p99 = scmp.ne.s32.totalorder %s90, %s91
      %p100 = scmp.eq.s32.totalorder %s17, 0
      %p101 = por %p99, %p100
      %p102 = scmp.ne.s32.totalorder %s90, %s91
      %p103 = scmp.eq.s32.totalorder %s18, 1
      %p104 = por %p102, %p103
      %p106 = scmp.ne.s32.totalorder %s91, %s105
      %p107 = scmp.eq.s32.totalorder %s18, 0
      %p108 = por %p106, %p107
      %s109 = ssub.s32 %s12, %s19
      %p110 = scmp.eq.s32.totalorder %s109, 0
      %s112 = sadd.s32 %s111, 1
      %s113 = scalar_select %p110, %s111, %s112
      %p116 = pneg %p110
      %p117 = scmp.eq.s32.totalorder %s12, 1
      %p118 = por %p116, %p117
      %p119 = scmp.ne.s32.totalorder %s111, %s114
      %p120 = scmp.eq.s32.totalorder %s12, 0
      %p121 = por %p119, %p120
      %p122 = scmp.ne.s32.totalorder %s111, %s114
      %p123 = scmp.eq.s32.totalorder %s17, 1
      %p124 = por %p122, %p123
      %p125 = scmp.ne.s32.totalorder %s114, %s115
      %p126 = scmp.eq.s32.totalorder %s17, 0
      %p127 = por %p125, %p126
      %p128 = scmp.ne.s32.totalorder %s114, %s115
      %p129 = scmp.eq.s32.totalorder %s18, 1
      %p130 = por %p128, %p129
      %p132 = scmp.ne.s32.totalorder %s115, %s131
      %p133 = scmp.eq.s32.totalorder %s18, 0
      %p134 = por %p132, %p133
      %p135 = scmp.le.s32.totalorder 1, %s12
      %p136 = scmp.lt.s32.totalorder %s12, 3
      %p137 = pnand %p135, %p136
      %p138 = pneg %p137
      // Predicated region
      $region9: #{_lambda_.1} parent=5 // pred_check
        _
      $region10: #{_lambda_.1} parent=5 // pred_check_branch
        %140 = sbr.rel (%p137) target = $region12
      $region11: #{_lambda_.1} parent=5 // pred_region
        %s141 = ssub.s32 %s12, 1
        // Predicated region
        $region13: #{_lambda_.1} parent=11 // pred_check
          %p142 = pneg %p59
        $region14: #{_lambda_.1} parent=11 // pred_check_branch
          %144 = sbr.rel (%p142) target = $region16
        $region15: #{_lambda_.1} parent=11 // pred_region
          _
        $region16: #{_lambda_.1} parent=11 // pred_fallthru
          _
        // Predicated region
        $region17: #{_lambda_.1} parent=11 // pred_check
          %p145 = pneg %p80
        $region18: #{_lambda_.1} parent=11 // pred_check_branch
          %147 = sbr.rel (%p145) target = $region20
        $region19: #{_lambda_.1} parent=11 // pred_region
          %s149 = ssub.s32 1536, 1536
          %150 = vsyncadd [#allocation3], %s149
          %s151 = sshll.u32 [#allocation2], 4
          %s152 = int_to_ptr.vmem [resolvable:$true] %s151
          %157 = dma.hbm_to_vmem [thread:$0]  %s2, 1536, %s152, [#allocation3], 128, 128, 8
        $region20: #{_lambda_.1} parent=11 // pred_fallthru
          _
        // Predicated region
        $region21: #{_lambda_.1} parent=11 // pred_check
          %p158 = pneg %p101
        $region22: #{_lambda_.1} parent=11 // pred_check_branch
          %160 = sbr.rel (%p158) target = $region24
        $region23: #{_lambda_.1} parent=11 // pred_region
          %s162 = ssub.s32 512, 512
          %163 = vsyncadd [#allocation5], %s162
          %s164 = sshll.u32 [#allocation4], 4
          %s165 = int_to_ptr.vmem [resolvable:$true] %s164
          %170 = dma.hbm_to_vmem [thread:$0]  %s3, 512, %s165, [#allocation5], 256, 256, 16
        $region24: #{_lambda_.1} parent=11 // pred_fallthru
          _
      $region12: #{_lambda_.1} parent=5 // pred_fallthru
        _
      %p171 = scmp.lt.s32.totalorder %s12, 2
      // Predicated region
      $region25: #{_lambda_.1} parent=5 // pred_check
        %p172 = pneg %p171
      $region26: #{_lambda_.1} parent=5 // pred_check_branch
        %174 = sbr.rel (%p172) target = $region28
      $region27: #{_lambda_.1} parent=5 // pred_region
        // Predicated region
        $region29: #{_lambda_.1} parent=27 // pred_check
          %p175 = pneg %p32
        $region30: #{_lambda_.1} parent=27 // pred_check_branch
          %177 = sbr.rel (%p175) target = $region32
        $region31: #{_lambda_.1} parent=27 // pred_region
          %p178 = scmp.lt.s32.totalorder %s12, 1
          %s179 = scalar_select %p178, %s12, 1
          %s180 = smul.addr %s179, 2
          %s181 = smul.addr %s180, 8
          %s182 = scalar_lea.vmem %s0, %s181
        $region32: #{_lambda_.1} parent=27 // pred_fallthru
          _
      $region28: #{_lambda_.1} parent=5 // pred_fallthru
        _
      %p183 = scmp.le.s32.totalorder 1, %s12
      %p184 = scmp.lt.s32.totalorder %s12, 3
      %p185 = pnand %p183, %p184
      %p186 = pneg %p185
      // Predicated region
      $region33: #{_lambda_.1} parent=5 // pred_check
        _
      $region34: #{_lambda_.1} parent=5 // pred_check_branch
        %188 = sbr.rel (%p185) target = $region36
      $region35: #{_lambda_.1} parent=5 // pred_region
        %s189 = ssub.s32 %s12, 1
        // Predicated region
        $region37: #{_lambda_.1} parent=35 // pred_check
          %p190 = pneg %p80
        $region38: #{_lambda_.1} parent=35 // pred_check_branch
          %192 = sbr.rel (%p190) target = $region40
        $region39: #{_lambda_.1} parent=35 // pred_region
          %193 = dma.done [#allocation3], 1536
        $region40: #{_lambda_.1} parent=35 // pred_fallthru
          _
        // Predicated region
        $region41: #{_lambda_.1} parent=35 // pred_check
          %p194 = pneg %p101
        $region42: #{_lambda_.1} parent=35 // pred_check_branch
          %196 = sbr.rel (%p194) target = $region44
        $region43: #{_lambda_.1} parent=35 // pred_region
          %197 = dma.done [#allocation5], 512
        $region44: #{_lambda_.1} parent=35 // pred_fallthru
          _
        %p198 = scmp.lt.s32.totalorder %s17, 1
        %s199 = scalar_select %p198, %s17, 1
        %s200 = smul.addr %s199, 2
        %s201 = smul.addr %s200, 8
        %s202 = scalar_lea.vmem %s0, %s201
        %p203 = pneg %p38
        %p204 = pneg %p35
        %p205 = pneg %p59
        %p206 = pneg %p56
        %p207 = pneg %p80
        %p208 = pneg %p77
        %p209 = pneg %p101
        %p210 = pneg %p98
        %p211 = pneg %p127
        %p212 = pneg %p124
        %p213 = scmp.lt.s32.totalorder %s17, 1
        %s214 = scalar_select %p213, %s17, 1
        %s215 = smul.addr %s214, 2
        %s216 = smul.addr %s215, 8
        %s217 = scalar_lea.vmem %s4, %s216
        %p218 = scmp.lt.s32.totalorder %s17, 1
        %s219 = scalar_select %p218, %s17, 1
        %s220 = smul.addr %s219, 2
        %s221 = smul.addr %s220, 8
        %s222 = scalar_lea.vmem %s0, %s221
        %p223 = scmp.lt.s32.totalorder %s17, 1
        %s224 = scalar_select %p223, %s17, 1
        %s225 = smul.addr %s224, 2
        %s226 = smul.addr %s225, 8
        %s227 = scalar_lea.vmem %s4, %s226
        %v229 = vld [vmem:[%s222] sm:$0xff]
        %v230 = vld [vmem:[%s222 + $0x8] sm:$0xff]
        %v231 = vpack.c.bf16 %v229, %v229
        %v232 = vpack.c.bf16 %v230, %v230
        %v233 = vld [vmem:[%s1] sm:$0xf]
        %v234 = vld [vmem:[%s1 + $0x4] sm:$0xf]
        %v235 = vld [vmem:[%s1 + $0x8] sm:$0xf]
        %v236 = vld [vmem:[%s1 + $0xc] sm:$0xf]
        %v237 = vld [vmem:[%s1 + $0x10] sm:$0xf]
        %v238 = vld [vmem:[%s1 + $0x14] sm:$0xf]
        %v239 = vld [vmem:[%s1 + $0x18] sm:$0xf]
        %v240 = vld [vmem:[%s1 + $0x1c] sm:$0xf]
        %v241 = vld [vmem:[%s1 + $0x20] sm:$0xf]
        %v242 = vld [vmem:[%s1 + $0x24] sm:$0xf]
        %v243 = vld [vmem:[%s1 + $0x28] sm:$0xf]
        %v244 = vld [vmem:[%s1 + $0x2c] sm:$0xf]
        %v245 = vld [vmem:[%s1 + $0x30] sm:$0xf]
        %v246 = vld [vmem:[%s1 + $0x34] sm:$0xf]
        %v247 = vld [vmem:[%s1 + $0x38] sm:$0xf]
        %v248 = vld [vmem:[%s1 + $0x3c] sm:$0xf]
        %v249 = vld [vmem:[%s1 + $0x40] sm:$0xf]
        %v250 = vld [vmem:[%s1 + $0x44] sm:$0xf]
        %v251 = vld [vmem:[%s1 + $0x48] sm:$0xf]
        %v252 = vld [vmem:[%s1 + $0x4c] sm:$0xf]
        %v253 = vld [vmem:[%s1 + $0x50] sm:$0xf]
        %v254 = vld [vmem:[%s1 + $0x54] sm:$0xf]
        %v255 = vld [vmem:[%s1 + $0x58] sm:$0xf]
        %v256 = vld [vmem:[%s1 + $0x5c] sm:$0xf]
        %v257 = vld [vmem:[%s1 + $0x60] sm:$0xf]
        %v258 = vld [vmem:[%s1 + $0x64] sm:$0xf]
        %v259 = vld [vmem:[%s1 + $0x68] sm:$0xf]
        %v260 = vld [vmem:[%s1 + $0x6c] sm:$0xf]
        %v261 = vld [vmem:[%s1 + $0x70] sm:$0xf]
        %v262 = vld [vmem:[%s1 + $0x74] sm:$0xf]
        %v263 = vld [vmem:[%s1 + $0x78] sm:$0xf]
        %v264 = vld [vmem:[%s1 + $0x7c] sm:$0xf]
        %v265 = vld [vmem:[#allocation4] ss:$0 sm:$0xff]
        %v298 = vunpack.c.l.b16 %v233
        %v299 = vunpack.c.l.b16 %v234
        %v300 = vunpack.c.l.b16 %v235
        %v301 = vunpack.c.l.b16 %v236
        %v302 = vunpack.c.l.b16 %v237
        %v303 = vunpack.c.l.b16 %v238
        %v304 = vunpack.c.l.b16 %v239
        %v305 = vunpack.c.l.b16 %v240
        %v306 = vunpack.c.l.b16 %v241
        %v307 = vunpack.c.l.b16 %v242
        %v308 = vunpack.c.l.b16 %v243
        %v309 = vunpack.c.l.b16 %v244
        %v310 = vunpack.c.l.b16 %v245
        %v311 = vunpack.c.l.b16 %v246
        %v312 = vunpack.c.l.b16 %v247
        %v313 = vunpack.c.l.b16 %v248
        %v314 = vunpack.c.l.b16 %v249
        %v315 = vunpack.c.l.b16 %v250
        %v316 = vunpack.c.l.b16 %v251
        %v317 = vunpack.c.l.b16 %v252
        %v318 = vunpack.c.l.b16 %v253
        %v319 = vunpack.c.l.b16 %v254
        %v320 = vunpack.c.l.b16 %v255
        %v321 = vunpack.c.l.b16 %v256
        %v322 = vunpack.c.l.b16 %v257
        %v323 = vunpack.c.l.b16 %v258
        %v324 = vunpack.c.l.b16 %v259
        %v325 = vunpack.c.l.b16 %v260
        %v326 = vunpack.c.l.b16 %v261
        %v327 = vunpack.c.l.b16 %v262
        %v328 = vunpack.c.l.b16 %v263
        %v329 = vunpack.c.l.b16 %v264
        %v330 = vpack.c.b16 %v299, %v298
        %v331 = vpack.c.b16 %v301, %v300
        %v332 = vpack.c.b16 %v303, %v302
        %v333 = vpack.c.b16 %v305, %v304
        %v334 = vpack.c.b16 %v307, %v306
        %v335 = vpack.c.b16 %v309, %v308
        %v336 = vpack.c.b16 %v311, %v310
        %v337 = vpack.c.b16 %v313, %v312
        %v338 = vpack.c.b16 %v315, %v314
        %v339 = vpack.c.b16 %v317, %v316
        %v340 = vpack.c.b16 %v319, %v318
        %v341 = vpack.c.b16 %v321, %v320
        %v342 = vpack.c.b16 %v323, %v322
        %v343 = vpack.c.b16 %v325, %v324
        %v344 = vpack.c.b16 %v327, %v326
        %v345 = vpack.c.b16 %v329, %v328
        %362 = vmatprep.subr.bf16.mxu0 0
        %363 = vmatpush1.bf16.msra.mxu0 %v337
        %364 = vmatprep.subr.bf16.mxu0 0
        %365 = vmatpush1.bf16.msra.mxu0 %v336
        %366 = vmatprep.subr.bf16.mxu0 0
        %367 = vmatpush1.bf16.msra.mxu0 %v335
        %368 = vmatprep.subr.bf16.mxu0 0
        %369 = vmatpush1.bf16.msra.mxu0 %v334
        %370 = vmatprep.subr.bf16.mxu0 0
        %371 = vmatpush1.bf16.msra.mxu0 %v333
        %372 = vmatprep.subr.bf16.mxu0 0
        %373 = vmatpush1.bf16.msra.mxu0 %v332
        %374 = vmatprep.subr.bf16.mxu0 0
        %375 = vmatpush1.bf16.msra.mxu0 %v331
        %376 = vmatprep.subr.bf16.mxu0 0
        %377 = vmatpush1.bf16.msra.mxu0 %v330
        %378 = vmatprep.subr.bf16.mxu0 0
        %379 = vmatpush2.bf16.msra.mxu0 %v345
        %380 = vmatprep.subr.bf16.mxu0 0
        %381 = vmatpush2.bf16.msra.mxu0 %v344
        %382 = vmatprep.subr.bf16.mxu0 0
        %383 = vmatpush2.bf16.msra.mxu0 %v343
        %384 = vmatprep.subr.bf16.mxu0 0
        %385 = vmatpush2.bf16.msra.mxu0 %v342
        %386 = vmatprep.subr.bf16.mxu0 0
        %387 = vmatpush2.bf16.msra.mxu0 %v341
        %388 = vmatprep.subr.bf16.mxu0 0
        %389 = vmatpush2.bf16.msra.mxu0 %v340
        %390 = vmatprep.subr.bf16.mxu0 0
        %391 = vmatpush2.bf16.msra.mxu0 %v339
        %392 = vmatprep.subr.bf16.mxu0 0
        %393 = vmatpush2.bf16.msra.mxu0 %v338
        %394 = vmatprep.mubr.bf16.mxu0 %v232
        %395 = vmatmul.mubr.bf16.gmra.mxu0 %v231
        %v396 = vpop.f32.mrf.mxu0
        %v397 = vadd.f32 %v265, %v396
        %v398 = vpop.f32.mrf.mxu0
        %v399 = vpop.f32.mrf.mxu0
        %v400 = vpop.f32.mrf.mxu0
        %401 = vdwg.mxu0
        %v402 = vld [vmem:[%s1 + $0x80] sm:$0xf]
        %v403 = vld [vmem:[%s1 + $0x84] sm:$0xf]
        %v404 = vld [vmem:[%s1 + $0x88] sm:$0xf]
        %v405 = vld [vmem:[%s1 + $0x8c] sm:$0xf]
        %v406 = vld [vmem:[%s1 + $0x90] sm:$0xf]
        %v407 = vld [vmem:[%s1 + $0x94] sm:$0xf]
        %v408 = vld [vmem:[%s1 + $0x98] sm:$0xf]
        %v409 = vld [vmem:[%s1 + $0x9c] sm:$0xf]
        %v410 = vld [vmem:[%s1 + $0xa0] sm:$0xf]
        %v411 = vld [vmem:[%s1 + $0xa4] sm:$0xf]
        %v412 = vld [vmem:[%s1 + $0xa8] sm:$0xf]
        %v413 = vld [vmem:[%s1 + $0xac] sm:$0xf]
        %v414 = vld [vmem:[%s1 + $0xb0] sm:$0xf]
        %v415 = vld [vmem:[%s1 + $0xb4] sm:$0xf]
        %v416 = vld [vmem:[%s1 + $0xb8] sm:$0xf]
        %v417 = vld [vmem:[%s1 + $0xbc] sm:$0xf]
        %v418 = vld [vmem:[%s1 + $0xc0] sm:$0xf]
        %v419 = vld [vmem:[%s1 + $0xc4] sm:$0xf]
        %v420 = vld [vmem:[%s1 + $0xc8] sm:$0xf]
        %v421 = vld [vmem:[%s1 + $0xcc] sm:$0xf]
        %v422 = vld [vmem:[#allocation2] sm:$0xf]
        %v423 = vld [vmem:[#allocation2 + $0x8] sm:$0xf]
        %v424 = vld [vmem:[#allocation2 + $0x10] sm:$0xf]
        %v425 = vld [vmem:[#allocation2 + $0x18] sm:$0xf]
        %v426 = vld [vmem:[#allocation4 + $0x2] ss:$0 sm:$0xff]
        %v427 = vld [vmem:[#allocation4 + $0x3] ss:$0 sm:$0xff]
        %v428 = vld [vmem:[#allocation4 + $0x4] ss:$0 sm:$0xff]
        %v429 = vld [vmem:[#allocation4 + $0x5] ss:$0 sm:$0xff]
        %v430 = vld [vmem:[#allocation4 + $0x6] ss:$0 sm:$0xff]
        %v431 = vld [vmem:[#allocation4 + $0x7] ss:$0 sm:$0xff]
        %v432 = vld [vmem:[#allocation4 + $0x10] ss:$0 sm:$0xff]
        %v433 = vpack.c.bf16 %v397, %v397
        %v438 = vunpack.c.l.b16 %v402
        %v439 = vunpack.c.l.b16 %v403
        %v440 = vunpack.c.l.b16 %v404
        %v441 = vunpack.c.l.b16 %v405
        %v442 = vpack.c.b16 %v439, %v438
        %v443 = vpack.c.b16 %v441, %v440
        %vm446 = vcmask 261120
        %v448 = vsel %vm446, %v433, 0
        %450 = vmatprep.subr.bf16.mxu0 0
        %451 = vmatpush1.bf16.msra.mxu0 0
        %452 = vmatprep.subr.bf16.mxu0 0
        %453 = vmatpush1.bf16.msra.mxu0 0
        %454 = vmatprep.subr.bf16.mxu0 0
        %455 = vmatpush1.bf16.msra.mxu0 0
        %456 = vmatprep.subr.bf16.mxu0 0
        %457 = vmatpush1.bf16.msra.mxu0 0
        %458 = vmatprep.subr.bf16.mxu0 0
        %459 = vmatpush1.bf16.msra.mxu0 0
        %460 = vmatprep.subr.bf16.mxu0 0
        %461 = vmatpush1.bf16.msra.mxu0 0
        %462 = vmatprep.subr.bf16.mxu0 0
        %463 = vmatpush1.bf16.msra.mxu0 %v443
        %464 = vmatprep.subr.bf16.mxu0 0
        %465 = vmatpush1.bf16.msra.mxu0 %v442
        %466 = vmatprep.subr.bf16.mxu0 0
        %467 = vmatpush2.bf16.msra.mxu0 0
        %468 = vmatprep.subr.bf16.mxu0 0
        %469 = vmatpush2.bf16.msra.mxu0 0
        %470 = vmatprep.subr.bf16.mxu0 0
        %471 = vmatpush2.bf16.msra.mxu0 0
        %472 = vmatprep.subr.bf16.mxu0 0
        %473 = vmatpush2.bf16.msra.mxu0 0
        %474 = vmatprep.subr.bf16.mxu0 0
        %475 = vmatpush2.bf16.msra.mxu0 0
        %476 = vmatprep.subr.bf16.mxu0 0
        %477 = vmatpush2.bf16.msra.mxu0 0
        %478 = vmatprep.subr.bf16.mxu0 0
        %479 = vmatpush2.bf16.msra.mxu0 0
        %480 = vmatprep.subr.bf16.mxu0 0
        %481 = vmatpush2.bf16.msra.mxu0 0
        %482 = vmatprep.mubr.bf16.mxu0 0
        %483 = vmatmul.mubr.bf16.gmra.mxu0 %v448
        %v484 = vpop.f32.mrf.mxu0
        %v485 = vadd.f32 %v426, %v484
        %v486 = vpop.f32.mrf.mxu0
        %v487 = vpop.f32.mrf.mxu0
        %v488 = vpop.f32.mrf.mxu0
        %489 = vdwg.mxu0
        %v490 = vsel %vm446, %v485, 0.0
        %491 = vadd.xlane.f32.xlu0 %v490
        %v492 = vpop.xlane.xlu0 %491
        %v493 = vrcp.pop 32.0
        %v494 = vmul.f32 %v492, %v493
        %v495 = vmul.f32 %v485, %v485
        %v496 = vsel %vm446, %v495, 0.0
        %497 = vadd.xlane.f32.xlu0 %v496
        %v498 = vpop.xlane.xlu0 %497
        %v499 = vmul.f32 %v498, %v493
        %v500 = vmul.f32 %v494, %v494
        %v501 = vsub.f32 %v499, %v500
        %v502 = vsub.f32 %v485, %v494
        %v503 = vadd.f32 %v501, 1e-05
        %v504 = vrsqrt.pop %v503
        %v505 = vmul.f32 %v502, %v504
        %v506 = vmul.f32 %v505, %v429
        %v507 = vadd.f32 %v506, %v430
        %v508 = vpack.c.bf16 %v507, %v507
        %v513 = vunpack.c.l.b16 %v422
        %v514 = vunpack.c.l.b16 %v423
        %v515 = vunpack.c.l.b16 %v424
        %v516 = vunpack.c.l.b16 %v425
        %v517 = vpack.c.b16 %v514, %v513
        %v518 = vpack.c.b16 %v516, %v515
        %v522 = vsel %vm446, %v508, 0
        %524 = vmatprep.subr.bf16.mxu0 0
        %525 = vmatpush1.bf16.msra.mxu0 0
        %526 = vmatprep.subr.bf16.mxu0 0
        %527 = vmatpush1.bf16.msra.mxu0 0
        %528 = vmatprep.subr.bf16.mxu0 0
        %529 = vmatpush1.bf16.msra.mxu0 0
        %530 = vmatprep.subr.bf16.mxu0 0
        %531 = vmatpush1.bf16.msra.mxu0 0
        %532 = vmatprep.subr.bf16.mxu0 0
        %533 = vmatpush1.bf16.msra.mxu0 0
        %534 = vmatprep.subr.bf16.mxu0 0
        %535 = vmatpush1.bf16.msra.mxu0 0
        %536 = vmatprep.subr.bf16.mxu0 0
        %537 = vmatpush1.bf16.msra.mxu0 %v518
        %538 = vmatprep.subr.bf16.mxu0 0
        %539 = vmatpush1.bf16.msra.mxu0 %v517
        %540 = vmatprep.subr.bf16.mxu0 0
        %541 = vmatpush2.bf16.msra.mxu0 0
        %542 = vmatprep.subr.bf16.mxu0 0
        %543 = vmatpush2.bf16.msra.mxu0 0
        %544 = vmatprep.subr.bf16.mxu0 0
        %545 = vmatpush2.bf16.msra.mxu0 0
        %546 = vmatprep.subr.bf16.mxu0 0
        %547 = vmatpush2.bf16.msra.mxu0 0
        %548 = vmatprep.subr.bf16.mxu0 0
        %549 = vmatpush2.bf16.msra.mxu0 0
        %550 = vmatprep.subr.bf16.mxu0 0
        %551 = vmatpush2.bf16.msra.mxu0 0
        %552 = vmatprep.subr.bf16.mxu0 0
        %553 = vmatpush2.bf16.msra.mxu0 0
        %554 = vmatprep.subr.bf16.mxu0 0
        %555 = vmatpush2.bf16.msra.mxu0 0
        %556 = vmatprep.mubr.bf16.mxu0 0
        %557 = vmatmul.mubr.bf16.gmra.mxu0 %v522
        %v558 = vpop.f32.mrf.mxu0
        %v559 = vadd.f32 %v427, %v558
        %v560 = vpop.f32.mrf.mxu0
        %v561 = vpop.f32.mrf.mxu0
        %v562 = vpop.f32.mrf.mxu0
        %563 = vdwg.mxu0
        %v564 = vmax.f32 %v559, 0.0
        %v565 = vpack.c.bf16 %v564, %v564
        %v582 = vunpack.c.l.b16 %v406
        %v583 = vunpack.c.l.b16 %v407
        %v584 = vunpack.c.l.b16 %v408
        %v585 = vunpack.c.l.b16 %v409
        %v586 = vunpack.c.l.b16 %v410
        %v587 = vunpack.c.l.b16 %v411
        %v588 = vunpack.c.l.b16 %v412
        %v589 = vunpack.c.l.b16 %v413
        %v590 = vunpack.c.l.b16 %v414
        %v591 = vunpack.c.l.b16 %v415
        %v592 = vunpack.c.l.b16 %v416
        %v593 = vunpack.c.l.b16 %v417
        %v594 = vunpack.c.l.b16 %v418
        %v595 = vunpack.c.l.b16 %v419
        %v596 = vunpack.c.l.b16 %v420
        %v597 = vunpack.c.l.b16 %v421
        %v598 = vpack.c.b16 %v583, %v582
        %v599 = vpack.c.b16 %v585, %v584
        %v600 = vpack.c.b16 %v587, %v586
        %v601 = vpack.c.b16 %v589, %v588
        %v602 = vpack.c.b16 %v591, %v590
        %v603 = vpack.c.b16 %v593, %v592
        %v604 = vpack.c.b16 %v595, %v594
        %v605 = vpack.c.b16 %v597, %v596
        %614 = vmatprep.subr.bf16.mxu0 0
        %615 = vmatpush1.bf16.msra.mxu0 %v605
        %616 = vmatprep.subr.bf16.mxu0 0
        %617 = vmatpush1.bf16.msra.mxu0 %v604
        %618 = vmatprep.subr.bf16.mxu0 0
        %619 = vmatpush1.bf16.msra.mxu0 %v603
        %620 = vmatprep.subr.bf16.mxu0 0
        %621 = vmatpush1.bf16.msra.mxu0 %v602
        %622 = vmatprep.subr.bf16.mxu0 0
        %623 = vmatpush1.bf16.msra.mxu0 %v601
        %624 = vmatprep.subr.bf16.mxu0 0
        %625 = vmatpush1.bf16.msra.mxu0 %v600
        %626 = vmatprep.subr.bf16.mxu0 0
        %627 = vmatpush1.bf16.msra.mxu0 %v599
        %628 = vmatprep.subr.bf16.mxu0 0
        %629 = vmatpush1.bf16.msra.mxu0 %v598
        %630 = vmatprep.subr.bf16.mxu0 0
        %631 = vmatpush2.bf16.msra.mxu0 0
        %632 = vmatprep.subr.bf16.mxu0 0
        %633 = vmatpush2.bf16.msra.mxu0 0
        %634 = vmatprep.subr.bf16.mxu0 0
        %635 = vmatpush2.bf16.msra.mxu0 0
        %636 = vmatprep.subr.bf16.mxu0 0
        %637 = vmatpush2.bf16.msra.mxu0 0
        %638 = vmatprep.subr.bf16.mxu0 0
        %639 = vmatpush2.bf16.msra.mxu0 0
        %640 = vmatprep.subr.bf16.mxu0 0
        %641 = vmatpush2.bf16.msra.mxu0 0
        %642 = vmatprep.subr.bf16.mxu0 0
        %643 = vmatpush2.bf16.msra.mxu0 0
        %644 = vmatprep.subr.bf16.mxu0 0
        %645 = vmatpush2.bf16.msra.mxu0 0
        %646 = vmatprep.mubr.bf16.mxu0 0
        %647 = vmatmul.mubr.bf16.gmra.mxu0 %v565
        %v648 = vpop.f32.mrf.mxu0
        %v649 = vadd.f32 %v428, %v648
        %v650 = vpop.f32.mrf.mxu0
        %v651 = vpop.f32.mrf.mxu0
        %v652 = vpop.f32.mrf.mxu0
        %653 = vdwg.mxu0
        %v654 = vadd.f32 %v507, %v649
        %v655 = vsel %vm446, %v654, 0.0
        %656 = vadd.xlane.f32.xlu0 %v655
        %v657 = vpop.xlane.xlu0 %656
        %v658 = vmul.f32 %v657, %v493
        %v659 = vmul.f32 %v654, %v654
        %v660 = vsel %vm446, %v659, 0.0
        %661 = vadd.xlane.f32.xlu0 %v660
        %v662 = vpop.xlane.xlu0 %661
        %v663 = vmul.f32 %v662, %v493
        %v664 = vmul.f32 %v658, %v658
        %v665 = vsub.f32 %v663, %v664
        %v666 = vsub.f32 %v654, %v658
        %v667 = vadd.f32 %v665, 1e-05
        %v668 = vrsqrt.pop %v667
        %v669 = vmul.f32 %v666, %v668
        %v670 = vmul.f32 %v669, %v431
        %v671 = vadd.f32 %v670, %v432
        %v672 = vld [vmem:[%s1 + $0xd0] sm:$0xf]
        %v673 = vld [vmem:[%s1 + $0xd4] sm:$0xf]
        %v674 = vld [vmem:[%s1 + $0xd8] sm:$0xf]
        %v675 = vld [vmem:[%s1 + $0xdc] sm:$0xf]
        %v676 = vld [vmem:[%s1 + $0xe0] sm:$0xf]
        %v677 = vld [vmem:[%s1 + $0xe4] sm:$0xf]
        %v678 = vld [vmem:[%s1 + $0xe8] sm:$0xf]
        %v679 = vld [vmem:[%s1 + $0xec] sm:$0xf]
        %v680 = vld [vmem:[%s1 + $0xf0] sm:$0xf]
        %v681 = vld [vmem:[%s1 + $0xf4] sm:$0xf]
        %v682 = vld [vmem:[%s1 + $0xf8] sm:$0xf]
        %v683 = vld [vmem:[%s1 + $0xfc] sm:$0xf]
        %v684 = vld [vmem:[%s1 + $0x100] sm:$0xf]
        %v685 = vld [vmem:[%s1 + $0x104] sm:$0xf]
        %v686 = vld [vmem:[%s1 + $0x108] sm:$0xf]
        %v687 = vld [vmem:[%s1 + $0x10c] sm:$0xf]
        %v688 = vld [vmem:[%s1 + $0x110] sm:$0xf]
        %v689 = vld [vmem:[%s1 + $0x114] sm:$0xf]
        %v690 = vld [vmem:[%s1 + $0x118] sm:$0xf]
        %v691 = vld [vmem:[%s1 + $0x11c] sm:$0xf]
        %v692 = vld [vmem:[#allocation2 + $0x20] sm:$0xf]
        %v693 = vld [vmem:[#allocation2 + $0x28] sm:$0xf]
        %v694 = vld [vmem:[#allocation2 + $0x30] sm:$0xf]
        %v695 = vld [vmem:[#allocation2 + $0x38] sm:$0xf]
        %v696 = vld [vmem:[#allocation4 + $0x11] ss:$0 sm:$0xff]
        %v697 = vld [vmem:[#allocation4 + $0x12] ss:$0 sm:$0xff]
        %v698 = vld [vmem:[#allocation4 + $0x13] ss:$0 sm:$0xff]
        %v699 = vld [vmem:[#allocation4 + $0x14] ss:$0 sm:$0xff]
        %v700 = vld [vmem:[#allocation4 + $0x15] ss:$0 sm:$0xff]
        %v701 = vld [vmem:[#allocation4 + $0x16] ss:$0 sm:$0xff]
        %v702 = vld [vmem:[#allocation4 + $0x17] ss:$0 sm:$0xff]
        %v703 = vpack.c.bf16 %v671, %v671
        %v708 = vunpack.c.l.b16 %v672
        %v709 = vunpack.c.l.b16 %v673
        %v710 = vunpack.c.l.b16 %v674
        %v711 = vunpack.c.l.b16 %v675
        %v712 = vpack.c.b16 %v709, %v708
        %v713 = vpack.c.b16 %v711, %v710
        %v717 = vsel %vm446, %v703, 0
        %719 = vmatprep.subr.bf16.mxu0 0
        %720 = vmatpush1.bf16.msra.mxu0 0
        %721 = vmatprep.subr.bf16.mxu0 0
        %722 = vmatpush1.bf16.msra.mxu0 0
        %723 = vmatprep.subr.bf16.mxu0 0
        %724 = vmatpush1.bf16.msra.mxu0 0
        %725 = vmatprep.subr.bf16.mxu0 0
        %726 = vmatpush1.bf16.msra.mxu0 0
        %727 = vmatprep.subr.bf16.mxu0 0
        %728 = vmatpush1.bf16.msra.mxu0 0
        %729 = vmatprep.subr.bf16.mxu0 0
        %730 = vmatpush1.bf16.msra.mxu0 0
        %731 = vmatprep.subr.bf16.mxu0 0
        %732 = vmatpush1.bf16.msra.mxu0 %v713
        %733 = vmatprep.subr.bf16.mxu0 0
        %734 = vmatpush1.bf16.msra.mxu0 %v712
        %735 = vmatprep.subr.bf16.mxu0 0
        %736 = vmatpush2.bf16.msra.mxu0 0
        %737 = vmatprep.subr.bf16.mxu0 0
        %738 = vmatpush2.bf16.msra.mxu0 0
        %739 = vmatprep.subr.bf16.mxu0 0
        %740 = vmatpush2.bf16.msra.mxu0 0
        %741 = vmatprep.subr.bf16.mxu0 0
        %742 = vmatpush2.bf16.msra.mxu0 0
        %743 = vmatprep.subr.bf16.mxu0 0
        %744 = vmatpush2.bf16.msra.mxu0 0
        %745 = vmatprep.subr.bf16.mxu0 0
        %746 = vmatpush2.bf16.msra.mxu0 0
        %747 = vmatprep.subr.bf16.mxu0 0
        %748 = vmatpush2.bf16.msra.mxu0 0
        %749 = vmatprep.subr.bf16.mxu0 0
        %750 = vmatpush2.bf16.msra.mxu0 0
        %751 = vmatprep.mubr.bf16.mxu0 0
        %752 = vmatmul.mubr.bf16.gmra.mxu0 %v717
        %v753 = vpop.f32.mrf.mxu0
        %v754 = vadd.f32 %v696, %v753
        %v755 = vpop.f32.mrf.mxu0
        %v756 = vpop.f32.mrf.mxu0
        %v757 = vpop.f32.mrf.mxu0
        %758 = vdwg.mxu0
        %v759 = vsel %vm446, %v754, 0.0
        %760 = vadd.xlane.f32.xlu0 %v759
        %v761 = vpop.xlane.xlu0 %760
        %v762 = vmul.f32 %v761, %v493
        %v763 = vmul.f32 %v754, %v754
        %v764 = vsel %vm446, %v763, 0.0
        %765 = vadd.xlane.f32.xlu0 %v764
        %v766 = vpop.xlane.xlu0 %765
        %v767 = vmul.f32 %v766, %v493
        %v768 = vmul.f32 %v762, %v762
        %v769 = vsub.f32 %v767, %v768
        %v770 = vsub.f32 %v754, %v762
        %v771 = vadd.f32 %v769, 1e-05
        %v772 = vrsqrt.pop %v771
        %v773 = vmul.f32 %v770, %v772
        %v774 = vmul.f32 %v773, %v699
        %v775 = vadd.f32 %v774, %v700
        %v776 = vpack.c.bf16 %v775, %v775
        %v781 = vunpack.c.l.b16 %v692
        %v782 = vunpack.c.l.b16 %v693
        %v783 = vunpack.c.l.b16 %v694
        %v784 = vunpack.c.l.b16 %v695
        %v785 = vpack.c.b16 %v782, %v781
        %v786 = vpack.c.b16 %v784, %v783
        %v790 = vsel %vm446, %v776, 0
        %792 = vmatprep.subr.bf16.mxu0 0
        %793 = vmatpush1.bf16.msra.mxu0 0
        %794 = vmatprep.subr.bf16.mxu0 0
        %795 = vmatpush1.bf16.msra.mxu0 0
        %796 = vmatprep.subr.bf16.mxu0 0
        %797 = vmatpush1.bf16.msra.mxu0 0
        %798 = vmatprep.subr.bf16.mxu0 0
        %799 = vmatpush1.bf16.msra.mxu0 0
        %800 = vmatprep.subr.bf16.mxu0 0
        %801 = vmatpush1.bf16.msra.mxu0 0
        %802 = vmatprep.subr.bf16.mxu0 0
        %803 = vmatpush1.bf16.msra.mxu0 0
        %804 = vmatprep.subr.bf16.mxu0 0
        %805 = vmatpush1.bf16.msra.mxu0 %v786
        %806 = vmatprep.subr.bf16.mxu0 0
        %807 = vmatpush1.bf16.msra.mxu0 %v785
        %808 = vmatprep.subr.bf16.mxu0 0
        %809 = vmatpush2.bf16.msra.mxu0 0
        %810 = vmatprep.subr.bf16.mxu0 0
        %811 = vmatpush2.bf16.msra.mxu0 0
        %812 = vmatprep.subr.bf16.mxu0 0
        %813 = vmatpush2.bf16.msra.mxu0 0
        %814 = vmatprep.subr.bf16.mxu0 0
        %815 = vmatpush2.bf16.msra.mxu0 0
        %816 = vmatprep.subr.bf16.mxu0 0
        %817 = vmatpush2.bf16.msra.mxu0 0
        %818 = vmatprep.subr.bf16.mxu0 0
        %819 = vmatpush2.bf16.msra.mxu0 0
        %820 = vmatprep.subr.bf16.mxu0 0
        %821 = vmatpush2.bf16.msra.mxu0 0
        %822 = vmatprep.subr.bf16.mxu0 0
        %823 = vmatpush2.bf16.msra.mxu0 0
        %824 = vmatprep.mubr.bf16.mxu0 0
        %825 = vmatmul.mubr.bf16.gmra.mxu0 %v790
        %v826 = vpop.f32.mrf.mxu0
        %v827 = vadd.f32 %v697, %v826
        %v828 = vpop.f32.mrf.mxu0
        %v829 = vpop.f32.mrf.mxu0
        %v830 = vpop.f32.mrf.mxu0
        %831 = vdwg.mxu0
        %v832 = vmax.f32 %v827, 0.0
        %v833 = vpack.c.bf16 %v832, %v832
        %v850 = vunpack.c.l.b16 %v676
        %v851 = vunpack.c.l.b16 %v677
        %v852 = vunpack.c.l.b16 %v678
        %v853 = vunpack.c.l.b16 %v679
        %v854 = vunpack.c.l.b16 %v680
        %v855 = vunpack.c.l.b16 %v681
        %v856 = vunpack.c.l.b16 %v682
        %v857 = vunpack.c.l.b16 %v683
        %v858 = vunpack.c.l.b16 %v684
        %v859 = vunpack.c.l.b16 %v685
        %v860 = vunpack.c.l.b16 %v686
        %v861 = vunpack.c.l.b16 %v687
        %v862 = vunpack.c.l.b16 %v688
        %v863 = vunpack.c.l.b16 %v689
        %v864 = vunpack.c.l.b16 %v690
        %v865 = vunpack.c.l.b16 %v691
        %v866 = vpack.c.b16 %v851, %v850
        %v867 = vpack.c.b16 %v853, %v852
        %v868 = vpack.c.b16 %v855, %v854
        %v869 = vpack.c.b16 %v857, %v856
        %v870 = vpack.c.b16 %v859, %v858
        %v871 = vpack.c.b16 %v861, %v860
        %v872 = vpack.c.b16 %v863, %v862
        %v873 = vpack.c.b16 %v865, %v864
        %882 = vmatprep.subr.bf16.mxu0 0
        %883 = vmatpush1.bf16.msra.mxu0 %v873
        %884 = vmatprep.subr.bf16.mxu0 0
        %885 = vmatpush1.bf16.msra.mxu0 %v872
        %886 = vmatprep.subr.bf16.mxu0 0
        %887 = vmatpush1.bf16.msra.mxu0 %v871
        %888 = vmatprep.subr.bf16.mxu0 0
        %889 = vmatpush1.bf16.msra.mxu0 %v870
        %890 = vmatprep.subr.bf16.mxu0 0
        %891 = vmatpush1.bf16.msra.mxu0 %v869
        %892 = vmatprep.subr.bf16.mxu0 0
        %893 = vmatpush1.bf16.msra.mxu0 %v868
        %894 = vmatprep.subr.bf16.mxu0 0
        %895 = vmatpush1.bf16.msra.mxu0 %v867
        %896 = vmatprep.subr.bf16.mxu0 0
        %897 = vmatpush1.bf16.msra.mxu0 %v866
        %898 = vmatprep.subr.bf16.mxu0 0
        %899 = vmatpush2.bf16.msra.mxu0 0
        %900 = vmatprep.subr.bf16.mxu0 0
        %901 = vmatpush2.bf16.msra.mxu0 0
        %902 = vmatprep.subr.bf16.mxu0 0
        %903 = vmatpush2.bf16.msra.mxu0 0
        %904 = vmatprep.subr.bf16.mxu0 0
        %905 = vmatpush2.bf16.msra.mxu0 0
        %906 = vmatprep.subr.bf16.mxu0 0
        %907 = vmatpush2.bf16.msra.mxu0 0
        %908 = vmatprep.subr.bf16.mxu0 0
        %909 = vmatpush2.bf16.msra.mxu0 0
        %910 = vmatprep.subr.bf16.mxu0 0
        %911 = vmatpush2.bf16.msra.mxu0 0
        %912 = vmatprep.subr.bf16.mxu0 0
        %913 = vmatpush2.bf16.msra.mxu0 0
        %914 = vmatprep.mubr.bf16.mxu0 0
        %915 = vmatmul.mubr.bf16.gmra.mxu0 %v833
        %v916 = vpop.f32.mrf.mxu0
        %v917 = vadd.f32 %v698, %v916
        %v918 = vpop.f32.mrf.mxu0
        %v919 = vpop.f32.mrf.mxu0
        %v920 = vpop.f32.mrf.mxu0
        %921 = vdwg.mxu0
        %v922 = vadd.f32 %v775, %v917
        %v923 = vsel %vm446, %v922, 0.0
        %924 = vadd.xlane.f32.xlu0 %v923
        %v925 = vpop.xlane.xlu0 %924
        %v926 = vmul.f32 %v925, %v493
        %v927 = vmul.f32 %v922, %v922
        %v928 = vsel %vm446, %v927, 0.0
        %929 = vadd.xlane.f32.xlu0 %v928
        %v930 = vpop.xlane.xlu0 %929
        %v931 = vmul.f32 %v930, %v493
        %v932 = vmul.f32 %v926, %v926
        %v933 = vsub.f32 %v931, %v932
        %v934 = vsub.f32 %v922, %v926
        %v935 = vadd.f32 %v933, 1e-05
        %v936 = vrsqrt.pop %v935
        %v937 = vmul.f32 %v934, %v936
        %v938 = vmul.f32 %v937, %v701
        %v939 = vadd.f32 %v938, %v702
        %v940 = vld [vmem:[#allocation2 + $0x40] sm:$0xff]
        %v941 = vld [vmem:[#allocation2 + $0x48] sm:$0xff]
        %v942 = vld [vmem:[#allocation2 + $0x50] sm:$0xff]
        %v943 = vld [vmem:[#allocation2 + $0x58] sm:$0xff]
        %v944 = vpack.c.bf16 %v939, %v939
        %s945 = scalar_lea.vmem [#allocation4], 1
        %v946 = vld [vmem:[%s945] ss:$8 sm:$0x3]
        %v948 = vlaneseq
        %v949 = vshrl.u32 %v948, 7
        %v950 = vsub.s32 0, %v949
        %v951 = vrot.slane %v946, %v950
        %v952 = vlaneseq
        %v953 = vshrl.u32 %v952, 7
        %v954 = vsub.s32 1, %v953
        %v955 = vrot.slane %v946, %v954
        %v962 = vunpack.c.l.b16 %v940
        %v963 = vunpack.c.h.b16 %v940
        %v964 = vunpack.c.l.b16 %v941
        %v965 = vunpack.c.h.b16 %v941
        %v966 = vunpack.c.l.b16 %v942
        %v967 = vunpack.c.h.b16 %v942
        %v968 = vunpack.c.l.b16 %v943
        %v969 = vunpack.c.h.b16 %v943
        %v970 = vpack.c.b16 %v964, %v962
        %v971 = vpack.c.b16 %v965, %v963
        %v972 = vpack.c.b16 %v968, %v966
        %v973 = vpack.c.b16 %v969, %v967
        %v979 = vsel %vm446, %v944, 0
        %981 = vmatprep.subr.bf16.mxu0 0
        %982 = vmatpush1.bf16.msra.mxu0 0
        %983 = vmatprep.subr.bf16.mxu0 0
        %984 = vmatpush1.bf16.msra.mxu0 0
        %985 = vmatprep.subr.bf16.mxu0 0
        %986 = vmatpush1.bf16.msra.mxu0 0
        %987 = vmatprep.subr.bf16.mxu0 0
        %988 = vmatpush1.bf16.msra.mxu0 0
        %989 = vmatprep.subr.bf16.mxu0 0
        %990 = vmatpush1.bf16.msra.mxu0 0
        %991 = vmatprep.subr.bf16.mxu0 0
        %992 = vmatpush1.bf16.msra.mxu0 0
        %993 = vmatprep.subr.bf16.mxu0 %v973
        %994 = vmatpush1.bf16.msra.mxu0 %v972
        %995 = vmatprep.subr.bf16.mxu0 %v971
        %996 = vmatpush1.bf16.msra.mxu0 %v970
        %997 = vmatprep.subr.bf16.mxu0 0
        %998 = vmatpush2.bf16.msra.mxu0 0
        %999 = vmatprep.subr.bf16.mxu0 0
        %1000 = vmatpush2.bf16.msra.mxu0 0
        %1001 = vmatprep.subr.bf16.mxu0 0
        %1002 = vmatpush2.bf16.msra.mxu0 0
        %1003 = vmatprep.subr.bf16.mxu0 0
        %1004 = vmatpush2.bf16.msra.mxu0 0
        %1005 = vmatprep.subr.bf16.mxu0 0
        %1006 = vmatpush2.bf16.msra.mxu0 0
        %1007 = vmatprep.subr.bf16.mxu0 0
        %1008 = vmatpush2.bf16.msra.mxu0 0
        %1009 = vmatprep.subr.bf16.mxu0 0
        %1010 = vmatpush2.bf16.msra.mxu0 0
        %1011 = vmatprep.subr.bf16.mxu0 0
        %1012 = vmatpush2.bf16.msra.mxu0 0
        %1013 = vmatprep.mubr.bf16.mxu0 0
        %1014 = vmatmul.mubr.bf16.gmra.mxu0 %v979
        %v1015 = vpop.f32.mrf.mxu0
        %v1016 = vadd.f32 %v951, %v1015
        %v1017 = vpop.f32.mrf.mxu0
        %v1018 = vadd.f32 %v955, %v1017
        %v1019 = vpop.f32.mrf.mxu0
        %v1020 = vpop.f32.mrf.mxu0
        %1021 = vdwg.mxu0
        %v1022 = vmax.f32 %v1016, 0.0
        %v1023 = vmax.f32 %v1018, 0.0
        %1024 = vst [vmem:[%s227] sm:$0xff] %v1022
        %1025 = vst [vmem:[%s227 + $0x8] sm:$0xff] %v1023
        %p1026 = scmp.lt.s32.totalorder %s17, 1
        %s1027 = scalar_select %p1026, %s17, 1
        %s1028 = smul.addr %s1027, 2
        %s1029 = smul.addr %s1028, 8
        %s1030 = scalar_lea.vmem %s4, %s1029
        // Predicated region
        $region45: #{_lambda_.1} parent=35 // pred_check
          %p1031 = pneg %p124
        $region46: #{_lambda_.1} parent=35 // pred_check_branch
          %1033 = sbr.rel (%p1031) target = $region48
        $region47: #{_lambda_.1} parent=35 // pred_region
          _
        $region48: #{_lambda_.1} parent=35 // pred_fallthru
          _
      $region36: #{_lambda_.1} parent=5 // pred_fallthru
        _
      %p1034 = scmp.le.s32.totalorder 2, %s12
      // Predicated region
      $region49: #{_lambda_.1} parent=5 // pred_check
        %p1035 = pneg %p1034
      $region50: #{_lambda_.1} parent=5 // pred_check_branch
        %1037 = sbr.rel (%p1035) target = $region52
      $region51: #{_lambda_.1} parent=5 // pred_region
        %s1038 = ssub.s32 %s12, 2
        // Predicated region
        $region53: #{_lambda_.1} parent=51 // pred_check
          %p1039 = pneg %p130
        $region54: #{_lambda_.1} parent=51 // pred_check_branch
          %1041 = sbr.rel (%p1039) target = $region56
        $region55: #{_lambda_.1} parent=51 // pred_region
          %p1042 = scmp.lt.s32.totalorder %s18, 1
          %s1043 = scalar_select %p1042, %s18, 1
          %s1044 = smul.addr %s1043, 2
          %s1045 = smul.addr %s1044, 8
          %s1046 = scalar_lea.vmem %s4, %s1045
        $region56: #{_lambda_.1} parent=51 // pred_fallthru
          _
      $region52: #{_lambda_.1} parent=5 // pred_fallthru
        _
    $region6: #{_lambda_.1} parent=1 // loop_footer
      %s16 = sadd.s32 1, %s12
    $region7: #{_lambda_.1} parent=1 // loop_footer_branch
      %11 = sbr.rel target = $region3
    $region8: #{_lambda_.1} parent=1 // loop_exit
      _
    %1047 = vsyncpa [#allocation3], 1
    %s1048 = scalar_lea.sflag [#allocation3], 1
    %1049 = vsyncpa %s1048, 1
    %1050 = vsyncpa [#allocation5], 1

</llo_original>
